<compile_context>
chip_gen: v7x
topology: tpu7x:2x2x1
jax: 0.10.0
libtpu: 0.0.40
codegen_flags: <defaults>
</compile_context>

<pallas_src>
import functools

import jax
import jax.numpy as jnp
from jax import lax
from jax.experimental import pallas as pl
from jax.experimental.pallas import tpu as pltpu

_LANES = 128
_SUBLANES = 8


def _round_up(x, m):
    return ((x + m - 1) // m) * m


def _margin_loss_kernel(margin_ref, pos_ref, neg_ref, out_ref, *,
                        rows, br, sub, steps_per_p):
    """Accumulate hinge sums of one (br, 128) block into a resident (1,8,128) block."""
    i = pl.program_id(0)          # parallel slice (megacore split on v7x)
    s = pl.program_id(1)          # reduction ("arbitrary") axis within the slice

    @pl.when(s == 0)
    def _():
        out_ref[...] = jnp.zeros_like(out_ref)

    margin = margin_ref[0]        # SMEM f32 scalar

    # Logical (unclamped) first row of this block.  The index_map clamps the
    # DMA to the last valid block, so overhang / padded rows simply fail the
    # row mask below and contribute exactly 0.
    row_base = (i * steps_per_p + s) * br

    # Row-granular mask is sufficient: the kernel only ever sees whole
    # 128-lane rows of the (n // 128 * 128)-element main slab.
    sub_iota = lax.broadcasted_iota(jnp.int32, (sub, _LANES), 0)

    def body(c, acc):
        r = pl.multiple_of(c * sub, sub)
        pos = pos_ref[pl.ds(r, sub), :].astype(jnp.float32)
        neg = neg_ref[pl.ds(r, sub), :].astype(jnp.float32)
        h = jnp.maximum(neg - pos + margin, 0.0)          # pure VPU work
        valid = (row_base + c * sub + sub_iota) < rows
        h = jnp.where(valid, h, 0.0)
        if sub != _SUBLANES:                               # e.g. bf16: (16,128)->(8,128)
            h = h.reshape(-1, _SUBLANES, _LANES).sum(axis=0)
        return acc + h

    acc = lax.fori_loop(0, br // sub, body,
                        jnp.zeros((_SUBLANES, _LANES), jnp.float32))
    out_ref[...] += acc[None]


def margin_loss(pos_score, neg_score, margin=1.0, *, block_rows=4096,
                num_parallel=2, small_n_threshold=65536):
    """MarginRankingLoss(margin) with target y = ones, 'mean' reduction."""
    assert pos_score.shape == neg_score.shape
    n = int(pos_score.size)
    assert n > 0

    pos_flat = pos_score.reshape(-1)
    neg_flat = neg_score.reshape(-1)

    # -- small-problem fast path: launch/prologue overhead dominates ---------
    if n < max(int(small_n_threshold), _LANES):
        return jnp.mean(jnp.maximum(
            neg_flat.astype(jnp.float32) - pos_flat.astype(jnp.float32)
            + jnp.float32(margin), 0.0))

    itemsize = jnp.dtype(pos_score.dtype).itemsize
    sub = _SUBLANES * max(1, 4 // itemsize)        # 8 rows (f32) / 16 rows (bf16)

    # Lane-dense main slab: n_main is a multiple of 128 -> free reshape.
    n_main = (n // _LANES) * _LANES
    rows = n_main // _LANES

    # Block size: large enough to amortize the ~0.35us/step overhead, capped so
    # 2 inputs x 2 buffers stay well inside every chip's scoped-VMEM budget.
    br = max(sub, min(_round_up(int(block_rows), sub), _round_up(rows, sub)))
    max_block_bytes = 4 * 1024 * 1024
    br_cap = max(sub, (max_block_bytes // (_LANES * itemsize)) // sub * sub)
    br = min(br, br_cap)
    steps = pl.cdiv(rows, br)

    # Keep both TensorCores busy on v7x: shrink the block rather than dropping
    # to a single parallel slice; each slice keeps >=2 steps so it still
    # double-buffers.  (On 1-TC v5e/v6e the parallel axis is harmless.)
    p = max(1, int(num_parallel))
    while p > 1 and steps < 2 * p and br > sub:
        br = max(sub, _round_up(br // 2, sub))
        steps = pl.cdiv(rows, br)
    if steps < 2 * p:
        p = 1
    steps_per_p = pl.cdiv(steps, p)
    last_block = steps - 1

    if n_main == n:
        pos2 = pos_flat.reshape(rows, _LANES)
        neg2 = neg_flat.reshape(rows, _LANES)
    else:
        # TODO(synk): ragged n%128 tail forces one copy of the main slab here;
        # pad num_neg upstream (multiple of 128) to make this zero-copy.
        pos2 = pos_flat[:n_main].reshape(rows, _LANES)
        neg2 = neg_flat[:n_main].reshape(rows, _LANES)

    def in_map(i, s):
        # Clamp overhang steps to the last valid block; their rows are masked
        # to zero inside the kernel (mask uses the *unclamped* row index).
        return (jnp.minimum(i * steps_per_p + s, last_block), 0)

    kernel = functools.partial(_margin_loss_kernel, rows=rows, br=br, sub=sub,
                               steps_per_p=steps_per_p)
    margin_arr = jnp.full((1,), margin, dtype=jnp.float32)

    partials = pl.pallas_call(
        kernel,
        out_shape=jax.ShapeDtypeStruct((p, _SUBLANES, _LANES), jnp.float32),
        grid_spec=pl.GridSpec(
            grid=(p, steps_per_p),
            in_specs=[
                pl.BlockSpec(memory_space=pltpu.MemorySpace.SMEM),
                pl.BlockSpec((br, _LANES), in_map),
                pl.BlockSpec((br, _LANES), in_map),
            ],
            out_specs=pl.BlockSpec((1, _SUBLANES, _LANES),
                                   lambda i, s: (i, 0, 0)),
        ),
        compiler_params=pltpu.CompilerParams(
            dimension_semantics=("parallel", "arbitrary"),
            vmem_limit_bytes=32 * 1024 * 1024),
        cost_estimate=pl.CostEstimate(
            flops=5 * n_main, transcendentals=0,
            bytes_accessed=2 * n_main * itemsize + p * _SUBLANES * _LANES * 4),
    )(margin_arr, pos2, neg2)

    total = jnp.sum(partials)

    tail = n - n_main
    if tail:
        pos_t = pos_flat[n_main:].astype(jnp.float32)
        neg_t = neg_flat[n_main:].astype(jnp.float32)
        total = total + jnp.sum(
            jnp.maximum(neg_t - pos_t + jnp.float32(margin), 0.0))

    return total * jnp.float32(1.0 / n)


if __name__ == "__main__":
    key = jax.random.PRNGKey(0)
    k1, k2, k3, k4, k5, k6 = jax.random.split(key, 6)

    # --- shipped config: args.train_bs=8, args.num_neg=16, args.margin=1.0
    #     (small-n fast path: fused XLA expression, no kernel launch)
    pos = jax.random.normal(k1, (8, 16), dtype=jnp.float32)
    neg = jax.random.normal(k2, (8, 16), dtype=jnp.float32)
    loss = jax.block_until_ready(margin_loss(pos, neg, 1.0))
    ref = jnp.mean(jnp.maximum(neg - pos + 1.0, 0.0))
    assert jnp.allclose(loss, ref, atol=1e-5, rtol=1e-5), (loss, ref)

    # --- Pallas path: n % 128 == 0, zero-copy reshape, multi-step grid,
    #     2 parallel slices (megacore split on v7x)
    pos2 = jax.random.normal(k3, (64, 256), dtype=jnp.float32)
    neg2 = jax.random.normal(k4, (64, 256), dtype=jnp.float32)
    loss2 = jax.block_until_ready(
        margin_loss(pos2, neg2, 0.5, block_rows=32, num_parallel=2,
                    small_n_threshold=0))
    ref2 = jnp.mean(jnp.maximum(neg2 - pos2 + 0.5, 0.0))
    assert jnp.allclose(loss2, ref2, atol=1e-5, rtol=1e-5), (loss2, ref2)

    # --- Pallas path with ragged n (n % 128 != 0): in-kernel row mask on the
    #     partial / overhang blocks + tiny tail epilogue in the wrapper
    pos3 = jax.random.normal(k5, (33, 101), dtype=jnp.float32)
    neg3 = jax.random.normal(k6, (33, 101), dtype=jnp.float32)
    loss3 = jax.block_until_ready(
        margin_loss(pos3, neg3, 1.0, block_rows=8, num_parallel=2,
                    small_n_threshold=0))
    ref3 = jnp.mean(jnp.maximum(neg3 - pos3 + 1.0, 0.0))
    assert jnp.allclose(loss3, ref3, atol=1e-5, rtol=1e-5), (loss3, ref3)

    print("KERNEL_OK")
</pallas_src>

<mosaic_0001>
module attributes {stable_mosaic.version = 11 : i64} {
  func.func @_margin_loss_kernel(%arg0: i32, %arg1: i32, %arg2: memref<1xf32, #tpu.memory_space<smem>>, %arg3: memref<32x128xf32, #tpu.memory_space<vmem>>, %arg4: memref<32x128xf32, #tpu.memory_space<vmem>>, %arg5: memref<1x8x128xf32, #tpu.memory_space<vmem>>) attributes {dimension_semantics = [#tpu.dimension_semantics<parallel>, #tpu.dimension_semantics<arbitrary>], iteration_bounds = array<i64: 2, 2>, scalar_prefetch = 0 : i64, scratch_operands = 0 : i64, tpu.core_type = #tpu.core_type<tc>, window_params = [{transform_indices = @transform_0, window_bounds = array<i64: 1>}, {transform_indices = @transform_1, window_bounds = array<i64: 32, 128>}, {transform_indices = @transform_2, window_bounds = array<i64: 32, 128>}, {transform_indices = @transform_3, window_bounds = array<i64: 1, 8, 128>}]} {
    %c0_i32 = arith.constant 0 : i32
    %0 = arith.cmpi eq, %arg1, %c0_i32 : i32
    %1 = arith.extui %0 : i1 to i32
    %c0_i32_0 = arith.constant 0 : i32
    %2 = arith.cmpi ne, %1, %c0_i32_0 : i32
    scf.if %2 {
      %cst_9 = arith.constant 0.000000e+00 : f32
      %15 = vector.broadcast %cst_9 : f32 to vector<1x8x128xf32>
      %c0_10 = arith.constant 0 : index
      %c0_11 = arith.constant 0 : index
      %c0_12 = arith.constant 0 : index
      %16 = vector.load %arg5[%c0_10, %c0_11, %c0_12] : memref<1x8x128xf32, #tpu.memory_space<vmem>>, vector<1x8x128xf32>
      tpu.vector_store %arg5[%c0_10, %c0_11, %c0_12], %15 {strides = array<i32>} : memref<1x8x128xf32, #tpu.memory_space<vmem>>, vector<1x8x128xf32>,
    } else {
    }
    %c0 = arith.constant 0 : index
    %3 = memref.load %arg2[%c0] : memref<1xf32, #tpu.memory_space<smem>>
    %c2_i32 = arith.constant 2 : i32
    %4 = arith.muli %arg0, %c2_i32 : i32
    %5 = arith.addi %4, %arg1 : i32
    %c32_i32 = arith.constant 32 : i32
    %6 = arith.muli %5, %c32_i32 : i32
    %7 = tpu.iota {dimensions = array<i32: 0>} : vector<8x128xi32>
    %cst = arith.constant 0.000000e+00 : f32
    %8 = vector.broadcast %cst : f32 to vector<8x128xf32>
    %c0_i32_1 = arith.constant 0 : i32
    %c4_i32 = arith.constant 4 : i32
    %9 = arith.addi %c0_i32_1, %c4_i32 : i32
    %c1_i32 = arith.constant 1 : i32
    %10 = scf.for %arg6 = %c0_i32_1 to %9 step %c1_i32 iter_args(%arg7 = %8) -> (vector<8x128xf32>)  : i32 {
      %c8_i32 = arith.constant 8 : i32
      %15 = arith.muli %arg6, %c8_i32 : i32
      %16 = tpu.assume_multiple %15, 8 : i32
      %17 = arith.index_cast %16 : i32 to index
      %c0_9 = arith.constant 0 : index
      %18 = vector.load %arg3[%17, %c0_9] : memref<32x128xf32, #tpu.memory_space<vmem>>, vector<8x128xf32>
      %19 = arith.index_cast %16 : i32 to index
      %c0_10 = arith.constant 0 : index
      %20 = vector.load %arg4[%19, %c0_10] : memref<32x128xf32, #tpu.memory_space<vmem>>, vector<8x128xf32>
      %21 = arith.subf %20, %18 : vector<8x128xf32>
      %22 = vector.broadcast %3 : f32 to vector<8x128xf32>
      %23 = arith.addf %21, %22 : vector<8x128xf32>
      %cst_11 = arith.constant 0.000000e+00 : f32
      %24 = vector.broadcast %cst_11 : f32 to vector<8x128xf32>
      %25 = arith.maximumf %23, %24 : vector<8x128xf32>
      %c8_i32_12 = arith.constant 8 : i32
      %26 = arith.muli %arg6, %c8_i32_12 : i32
      %27 = arith.addi %6, %26 : i32
      %28 = vector.broadcast %27 : i32 to vector<8x128xi32>
      %29 = arith.addi %28, %7 : vector<8x128xi32>
      %c128_i32 = arith.constant 128 : i32
      %30 = vector.broadcast %c128_i32 : i32 to vector<8x128xi32>
      %31 = arith.cmpi slt, %29, %30 : vector<8x128xi32>
      %cst_13 = arith.constant 0.000000e+00 : f32
      %32 = vector.broadcast %cst_13 : f32 to vector<8x128xf32>
      %33 = arith.select %31, %25, %32 : vector<8x128xi1>, vector<8x128xf32>
      %34 = arith.addf %arg7, %33 : vector<8x128xf32>
      scf.yield %34 : vector<8x128xf32>
    }
    %c4_i32_2 = arith.constant 4 : i32
    %c0_3 = arith.constant 0 : index
    %c0_4 = arith.constant 0 : index
    %c0_5 = arith.constant 0 : index
    %11 = vector.load %arg5[%c0_3, %c0_4, %c0_5] : memref<1x8x128xf32, #tpu.memory_space<vmem>>, vector<1x8x128xf32>
    %12 = vector.shape_cast %10 : vector<8x128xf32> to vector<1x8x128xf32>
    %13 = arith.addf %11, %12 : vector<1x8x128xf32>
    %c0_6 = arith.constant 0 : index
    %c0_7 = arith.constant 0 : index
    %c0_8 = arith.constant 0 : index
    %14 = vector.load %arg5[%c0_6, %c0_7, %c0_8] : memref<1x8x128xf32, #tpu.memory_space<vmem>>, vector<1x8x128xf32>
    tpu.vector_store %arg5[%c0_6, %c0_7, %c0_8], %13 {strides = array<i32>} : memref<1x8x128xf32, #tpu.memory_space<vmem>>, vector<1x8x128xf32>,
    return
  }
  func.func @transform_0(%arg0: i32, %arg1: i32) -> i32 {
    %c0_i32 = arith.constant 0 : i32
    %c0_i32_0 = arith.constant 0 : i32
    return %c0_i32 : i32
  }
  func.func @transform_1(%arg0: i32, %arg1: i32) -> (i32, i32) {
    %c2_i32 = arith.constant 2 : i32
    %0 = arith.muli %arg0, %c2_i32 : i32
    %1 = arith.addi %0, %arg1 : i32
    %c3_i32 = arith.constant 3 : i32
    %2 = arith.minsi %1, %c3_i32 : i32
    %c0_i32 = arith.constant 0 : i32
    %c0_i32_0 = arith.constant 0 : i32
    return %2, %c0_i32 : i32, i32
  }
  func.func @transform_2(%arg0: i32, %arg1: i32) -> (i32, i32) {
    %c2_i32 = arith.constant 2 : i32
    %0 = arith.muli %arg0, %c2_i32 : i32
    %1 = arith.addi %0, %arg1 : i32
    %c3_i32 = arith.constant 3 : i32
    %2 = arith.minsi %1, %c3_i32 : i32
    %c0_i32 = arith.constant 0 : i32
    %c0_i32_0 = arith.constant 0 : i32
    return %2, %c0_i32 : i32, i32
  }
  func.func @transform_3(%arg0: i32, %arg1: i32) -> (i32, i32, i32) {
    %c0_i32 = arith.constant 0 : i32
    %c0_i32_0 = arith.constant 0 : i32
    %c0_i32_1 = arith.constant 0 : i32
    return %arg0, %c0_i32, %c0_i32_0 : i32, i32, i32
  }
}

</mosaic_0001>

<llo_original>
// kernel: tpu_custom_call.1
$region0: #{tpu_custom_call.1}
  #allocation0 [shape = 'u32[]', space=smem, size = 0x4, offset = 0x4, fixed_abs, tag = 'smem constant byte address 0x4 - core index']
  #allocation1 [shape = 'u32[144,128]{1,0:T(1,128)}', space=vmem, size = 0x12000, scoped, tag = 'internal scratch']
  #allocation2 [shape = 'f32[1]{0:T(128)S(6)}', space=smem, size = 0x200, scoped, tag = 'scoped memory for tpu_custom_call.1']
  %s0 = inlined_call_operand.<no memory space> [shape: f32[1], index: 0, kind: input, shape index: {}]
  %s1 = inlined_call_operand.hbm [shape: f32[128,128], index: 1, kind: input, shape index: {}]
  %s2 = inlined_call_operand.hbm [shape: f32[128,128], index: 2, kind: input, shape index: {}]
  %s3 = inlined_call_operand.hbm [shape: f32[2,8,128], index: 3, kind: output, shape index: {}]
  %s4 = sld [smem:[#allocation0]]
  $region64: #{tpu_custom_call.1} parent=0
    _
  %s6 = ssub.s32 1, %s4
  %s7 = scalar_select 0, %s6, %s4
  %8 = sst [smem:[#allocation2]] %s0
  $region1: #{tpu_custom_call.1} parent=0
    #allocation3 [shape = 'u8[32768]{0}', space=vmem, size = 0x8000, scoped, tag = 'input window, operand 1']
    #allocation4 [shape = 's32[2]{0}', space=sflag, size = 0x8, scoped, tag = 'scoped memory for tpu_custom_call.1']
    #allocation5 [shape = 's32[2]{0}', space=sflag, size = 0x8, scoped, tag = 'scoped memory for tpu_custom_call.1']
    #allocation6 [shape = 'u8[32768]{0}', space=vmem, size = 0x8000, scoped, tag = 'input window, operand 2']
    #allocation7 [shape = 's32[2]{0}', space=sflag, size = 0x8, scoped, tag = 'scoped memory for tpu_custom_call.1']
    #allocation8 [shape = 'u8[8192]{0}', space=vmem, size = 0x2000, scoped, tag = 'output window, operand 0']
    %9 = vsyncpa [#allocation4], 0
    %s10 = scalar_lea.sflag [#allocation4], 1
    %11 = vsyncpa %s10, 0
    %12 = vsyncpa [#allocation7], 0
    %s13 = scalar_lea.sflag [#allocation7], 1
    %14 = vsyncpa %s13, 0
    %15 = vsyncpa [#allocation5], 0
    %s16 = scalar_lea.sflag [#allocation5], 1
    %17 = vsyncpa %s16, 0
    loop: start=0, step=1, limit=6
    $region2: #{tpu_custom_call.1} parent=1 // loop_pre_header
      _
    $region3: #{tpu_custom_call.1} parent=1 // loop_header
      %s19 = sphi 0, %s23
      %p20 = scmp.ge.s32.totalorder %s19, 6
      %s26 = sphi 0, %s38
      %s27 = sphi 0, %s34
      %s28 = sphi 0, %s26
      %s29 = sphi 0, %s27
      %s30 = sphi 0, %s28
      %s31 = sphi 0, %s29
      %s39 = sphi 0, %s39
      %s41 = sphi 0, %s39
      %s42 = sphi 0, %s41
      %s56 = sphi 0, %s42
      %s70 = sphi 0, %s72
      %s73 = sphi 0, %s70
      %s74 = sphi 0, %s73
      %s90 = sphi 0, %s74
      %s104 = sphi 0, %s106
      %s107 = sphi 0, %s104
      %s108 = sphi 0, %s107
      %s124 = sphi 0, %s108
      %s130 = sphi 0, %s132
      %s133 = sphi 0, %s130
      %s134 = sphi 0, %s133
      %s150 = sphi 0, %s134
    $region4: #{tpu_custom_call.1} parent=1 // loop_header_branch
      %22 = sbr.rel (%p20) target = $region8
    $region5: #{tpu_custom_call.1} parent=1 // loop_body
      %s24 = ssub.s32 %s19, 1
      %s25 = ssub.s32 %s19, 2
      %s32 = sadd.s32 1, %s27
      %p33 = scmp.ge.s32.totalorder %s32, 2
      %s34 = scalar_select %p33, 0, %s32
      %s35 = sadd.s32 1, %s26
      %s36 = scalar_select %p33, %s35, %s26
      %p37 = scmp.ge.s32.totalorder %s36, 2
      %s38 = scalar_select %p37, 0, %s36
      %s40 = sadd.s32 %s39, 1
      %p43 = scmp.eq.s32.totalorder %s19, 3
      %p44 = scmp.ne.s32.totalorder %s39, %s41
      %p45 = scmp.eq.s32.totalorder %s19, 0
      %p46 = por %p44, %p45
      %p47 = scmp.ne.s32.totalorder %s39, %s41
      %p48 = scmp.eq.s32.totalorder %s24, 3
      %p49 = por %p47, %p48
      %p50 = scmp.ne.s32.totalorder %s41, %s42
      %p51 = scmp.eq.s32.totalorder %s24, 0
      %p52 = por %p50, %p51
      %p53 = scmp.ne.s32.totalorder %s41, %s42
      %p54 = scmp.eq.s32.totalorder %s25, 3
      %p55 = por %p53, %p54
      %p57 = scmp.ne.s32.totalorder %s42, %s56
      %p58 = scmp.eq.s32.totalorder %s25, 0
      %p59 = por %p57, %p58
      %s60 = smul.u32 %s26, 2
      %s61 = sadd.s32 %s60, %s27
      %p62 = scmp.lt.s32.totalorder %s61, 3
      %s63 = scalar_select %p62, %s61, 3
      %s64 = smul.u32 %s38, 2
      %s65 = sadd.s32 %s64, %s34
      %p66 = scmp.lt.s32.totalorder %s65, 3
      %s67 = scalar_select %p66, %s65, 3
      %s68 = ssub.s32 %s63, %s67
      %p69 = scmp.eq.s32.totalorder %s68, 0
      %s71 = sadd.s32 %s70, 1
      %s72 = scalar_select %p69, %s70, %s71
      %p75 = pneg %p69
      %p76 = scmp.eq.s32.totalorder %s19, 3
      %p77 = por %p75, %p76
      %p78 = scmp.ne.s32.totalorder %s70, %s73
      %p79 = scmp.eq.s32.totalorder %s19, 0
      %p80 = por %p78, %p79
      %p81 = scmp.ne.s32.totalorder %s70, %s73
      %p82 = scmp.eq.s32.totalorder %s24, 3
      %p83 = por %p81, %p82
      %p84 = scmp.ne.s32.totalorder %s73, %s74
      %p85 = scmp.eq.s32.totalorder %s24, 0
      %p86 = por %p84, %p85
      %p87 = scmp.ne.s32.totalorder %s73, %s74
      %p88 = scmp.eq.s32.totalorder %s25, 3
      %p89 = por %p87, %p88
      %p91 = scmp.ne.s32.totalorder %s74, %s90
      %p92 = scmp.eq.s32.totalorder %s25, 0
      %p93 = por %p91, %p92
      %s94 = smul.u32 %s26, 2
      %s95 = sadd.s32 %s94, %s27
      %p96 = scmp.lt.s32.totalorder %s95, 3
      %s97 = scalar_select %p96, %s95, 3
      %s98 = smul.u32 %s38, 2
      %s99 = sadd.s32 %s98, %s34
      %p100 = scmp.lt.s32.totalorder %s99, 3
      %s101 = scalar_select %p100, %s99, 3
      %s102 = ssub.s32 %s97, %s101
      %p103 = scmp.eq.s32.totalorder %s102, 0
      %s105 = sadd.s32 %s104, 1
      %s106 = scalar_select %p103, %s104, %s105
      %p109 = pneg %p103
      %p110 = scmp.eq.s32.totalorder %s19, 3
      %p111 = por %p109, %p110
      %p112 = scmp.ne.s32.totalorder %s104, %s107
      %p113 = scmp.eq.s32.totalorder %s19, 0
      %p114 = por %p112, %p113
      %p115 = scmp.ne.s32.totalorder %s104, %s107
      %p116 = scmp.eq.s32.totalorder %s24, 3
      %p117 = por %p115, %p116
      %p118 = scmp.ne.s32.totalorder %s107, %s108
      %p119 = scmp.eq.s32.totalorder %s24, 0
      %p120 = por %p118, %p119
      %p121 = scmp.ne.s32.totalorder %s107, %s108
      %p122 = scmp.eq.s32.totalorder %s25, 3
      %p123 = por %p121, %p122
      %p125 = scmp.ne.s32.totalorder %s108, %s124
      %p126 = scmp.eq.s32.totalorder %s25, 0
      %p127 = por %p125, %p126
      %s128 = ssub.s32 %s26, %s38
      %p129 = scmp.eq.s32.totalorder %s128, 0
      %s131 = sadd.s32 %s130, 1
      %s132 = scalar_select %p129, %s130, %s131
      %p135 = pneg %p129
      %p136 = scmp.eq.s32.totalorder %s19, 3
      %p137 = por %p135, %p136
      %p138 = scmp.ne.s32.totalorder %s130, %s133
      %p139 = scmp.eq.s32.totalorder %s19, 0
      %p140 = por %p138, %p139
      %p141 = scmp.ne.s32.totalorder %s130, %s133
      %p142 = scmp.eq.s32.totalorder %s24, 3
      %p143 = por %p141, %p142
      %p144 = scmp.ne.s32.totalorder %s133, %s134
      %p145 = scmp.eq.s32.totalorder %s24, 0
      %p146 = por %p144, %p145
      %p147 = scmp.ne.s32.totalorder %s133, %s134
      %p148 = scmp.eq.s32.totalorder %s25, 3
      %p149 = por %p147, %p148
      %p151 = scmp.ne.s32.totalorder %s134, %s150
      %p152 = scmp.eq.s32.totalorder %s25, 0
      %p153 = por %p151, %p152
      %p154 = scmp.le.s32.totalorder 1, %s19
      %p155 = scmp.lt.s32.totalorder %s19, 5
      %p156 = pnand %p154, %p155
      %p157 = pneg %p156
      // Predicated region
      $region9: #{tpu_custom_call.1} parent=5 // pred_check
        _
      $region10: #{tpu_custom_call.1} parent=5 // pred_check_branch
        %159 = sbr.rel (%p156) target = $region12
      $region11: #{tpu_custom_call.1} parent=5 // pred_region
        %s160 = ssub.s32 %s19, 1
        // Predicated region
        $region13: #{tpu_custom_call.1} parent=11 // pred_check
          %p161 = pneg %p52
        $region14: #{tpu_custom_call.1} parent=11 // pred_check_branch
          %163 = sbr.rel (%p161) target = $region16
        $region15: #{tpu_custom_call.1} parent=11 // pred_region
          _
        $region16: #{tpu_custom_call.1} parent=11 // pred_fallthru
          _
      $region12: #{tpu_custom_call.1} parent=5 // pred_fallthru
        _
      %p164 = scmp.lt.s32.totalorder %s19, 4
      // Predicated region
      $region17: #{tpu_custom_call.1} parent=5 // pred_check
        %p165 = pneg %p164
      $region18: #{tpu_custom_call.1} parent=5 // pred_check_branch
        %167 = sbr.rel (%p165) target = $region20
      $region19: #{tpu_custom_call.1} parent=5 // pred_region
        // Predicated region
        $region21: #{tpu_custom_call.1} parent=19 // pred_check
          %p168 = pneg %p80
        $region22: #{tpu_custom_call.1} parent=19 // pred_check_branch
          %170 = sbr.rel (%p168) target = $region24
        $region23: #{tpu_custom_call.1} parent=19 // pred_region
          %s171 = sand.u32 %s70, 1
          %s172 = scalar_lea.sflag [#allocation4], %s171
          %s173 = sand.u32 %s70, 1
          %s174 = smul.addr %s173, 32
          %s175 = scalar_lea.vmem [#allocation3], %s174
          %s176 = smul.u32 %s26, 2
          %s177 = sadd.s32 %s176, %s27
          %p178 = scmp.lt.s32.totalorder %s177, 3
          %s179 = scalar_select %p178, %s177, 3
          %s180 = smul.u32 4, %s179
          %s182 = ssub.s32 512, 512
          %183 = vsyncadd %s172, %s182
          %s184 = smul.addr %s180, 128
          %s185 = scalar_lea.hbm %s1, %s184
          %s186 = sshll.u32 %s175, 4
          %s187 = int_to_ptr.vmem [resolvable:$true] %s186
          %192 = dma.hbm_to_vmem [thread:$0]  %s185, 512, %s187, %s172, 128, 128, 8
        $region24: #{tpu_custom_call.1} parent=19 // pred_fallthru
          _
        // Predicated region
        $region25: #{tpu_custom_call.1} parent=19 // pred_check
          %p193 = pneg %p114
        $region26: #{tpu_custom_call.1} parent=19 // pred_check_branch
          %195 = sbr.rel (%p193) target = $region28
        $region27: #{tpu_custom_call.1} parent=19 // pred_region
          %s196 = sand.u32 %s104, 1
          %s197 = scalar_lea.sflag [#allocation7], %s196
          %s198 = sand.u32 %s104, 1
          %s199 = smul.addr %s198, 32
          %s200 = scalar_lea.vmem [#allocation6], %s199
          %s201 = smul.u32 %s26, 2
          %s202 = sadd.s32 %s201, %s27
          %p203 = scmp.lt.s32.totalorder %s202, 3
          %s204 = scalar_select %p203, %s202, 3
          %s205 = smul.u32 4, %s204
          %s207 = ssub.s32 512, 512
          %208 = vsyncadd %s197, %s207
          %s209 = smul.addr %s205, 128
          %s210 = scalar_lea.hbm %s2, %s209
          %s211 = sshll.u32 %s200, 4
          %s212 = int_to_ptr.vmem [resolvable:$true] %s211
          %217 = dma.hbm_to_vmem [thread:$0]  %s210, 512, %s212, %s197, 128, 128, 8
        $region28: #{tpu_custom_call.1} parent=19 // pred_fallthru
          _
      $region20: #{tpu_custom_call.1} parent=5 // pred_fallthru
        _
      %p218 = scmp.le.s32.totalorder 1, %s19
      %p219 = scmp.lt.s32.totalorder %s19, 5
      %p220 = pnand %p218, %p219
      %p221 = pneg %p220
      // Predicated region
      $region29: #{tpu_custom_call.1} parent=5 // pred_check
        _
      $region30: #{tpu_custom_call.1} parent=5 // pred_check_branch
        %223 = sbr.rel (%p220) target = $region32
      $region31: #{tpu_custom_call.1} parent=5 // pred_region
        %s224 = ssub.s32 %s19, 1
        %s225 = sand.u32 %s73, 1
        %s226 = scalar_lea.sflag [#allocation4], %s225
        %s227 = sand.u32 %s73, 1
        %s228 = smul.addr %s227, 32
        %s229 = scalar_lea.vmem [#allocation3], %s228
        // Predicated region
        $region33: #{tpu_custom_call.1} parent=31 // pred_check
          %p230 = pneg %p86
        $region34: #{tpu_custom_call.1} parent=31 // pred_check_branch
          %232 = sbr.rel (%p230) target = $region36
        $region35: #{tpu_custom_call.1} parent=31 // pred_region
          %233 = dma.done %s226, 512
        $region36: #{tpu_custom_call.1} parent=31 // pred_fallthru
          _
        %s234 = sand.u32 %s107, 1
        %s235 = scalar_lea.sflag [#allocation7], %s234
        %s236 = sand.u32 %s107, 1
        %s237 = smul.addr %s236, 32
        %s238 = scalar_lea.vmem [#allocation6], %s237
        // Predicated region
        $region37: #{tpu_custom_call.1} parent=31 // pred_check
          %p239 = pneg %p120
        $region38: #{tpu_custom_call.1} parent=31 // pred_check_branch
          %241 = sbr.rel (%p239) target = $region40
        $region39: #{tpu_custom_call.1} parent=31 // pred_region
          %242 = dma.done %s235, 512
        $region40: #{tpu_custom_call.1} parent=31 // pred_fallthru
          _
        %p243 = pneg %p52
        %p244 = pneg %p49
        %s245 = sand.u32 %s73, 1
        %s246 = scalar_lea.sflag [#allocation4], %s245
        %s247 = sand.u32 %s73, 1
        %s248 = smul.addr %s247, 32
        %s249 = scalar_lea.vmem [#allocation3], %s248
        %p250 = pneg %p86
        %p251 = pneg %p83
        %s252 = sand.u32 %s107, 1
        %s253 = scalar_lea.sflag [#allocation7], %s252
        %s254 = sand.u32 %s107, 1
        %s255 = smul.addr %s254, 32
        %s256 = scalar_lea.vmem [#allocation6], %s255
        %p257 = pneg %p120
        %p258 = pneg %p117
        %p259 = pneg %p146
        %p260 = pneg %p143
        %s261 = sand.u32 %s133, 1
        %s262 = scalar_lea.sflag [#allocation5], %s261
        %s263 = sand.u32 %s133, 1
        %s264 = smul.addr %s263, 8
        %s265 = scalar_lea.vmem [#allocation8], %s264
        %s266 = smul.u32 %s28, 2
        %s267 = sadd.s32 %s266, %s29
        %p268 = scmp.lt.s32.totalorder %s267, 3
        %s269 = scalar_select %p268, %s267, 3
        %s270 = smul.u32 4, %s269
        %s271 = smul.u32 %s28, 2
        %s272 = sadd.s32 %s271, %s29
        %p273 = scmp.lt.s32.totalorder %s272, 3
        %s274 = scalar_select %p273, %s272, 3
        %s275 = smul.u32 4, %s274
        %p276 = scmp.eq.s32.totalorder %s29, 0
        // Predicated region
        $region41: #{tpu_custom_call.1} parent=31 // pred_check
          %p277 = pneg %p276
        $region42: #{tpu_custom_call.1} parent=31 // pred_check_branch
          %279 = sbr.rel (%p277) target = $region44
        $region43: #{tpu_custom_call.1} parent=31 // pred_region
          %280 = vst [vmem:[%s265] sm:$0xff] 0.0
        $region44: #{tpu_custom_call.1} parent=31 // pred_fallthru
          _
        %s281 = sld [smem:[#allocation2]]
        %s282 = smul.u32 %s28, 2
        %s283 = sadd.s32 %s282, %s29
        %s284 = smul.u32 %s283, 32
        %v285 = vlaneseq
        %v286 = vshrl.u32 %v285, 7
        loop: start=0, step=1, limit=4
        $region45: #{tpu_custom_call.1} parent=31 // loop_pre_header
          _
        $region46: #{tpu_custom_call.1} parent=31 // loop_header
          %s288 = sphi 0, %s292
          %p289 = scmp.ge.s32.totalorder %s288, 4
          %v293 = vphi 0.0, %v308
        $region47: #{tpu_custom_call.1} parent=31 // loop_header_branch
          %291 = sbr.rel (%p289) target = $region51
        $region48: #{tpu_custom_call.1} parent=31 // loop_body
          %s294 = smul.u32 %s288, 8
          %s295 = scalar_lea.vmem %s229, %s294 [#allocation3]
          %v296 = vld [vmem:[%s295] sm:$0xff]
          %s297 = scalar_lea.vmem %s238, %s294 [#allocation6]
          %v298 = vld [vmem:[%s297] sm:$0xff]
          %v299 = vsub.f32 %v298, %v296
          %v300 = vstv %s281
          %v301 = vadd.f32 %v299, %v300
          %v302 = vmax.f32 %v301, 0.0
          %s303 = sadd.s32 %s284, %s294
          %v304 = vstv %s303
          %v305 = vadd.s32 %v304, %v286
          %vm306 = vcmp.lt.s32.totalorder %v305, 128
          %v307 = vsel %vm306, %v302, 0.0
          %v308 = vadd.f32 %v293, %v307
        $region49: #{tpu_custom_call.1} parent=31 // loop_footer
          %s292 = sadd.s32 1, %s288
        $region50: #{tpu_custom_call.1} parent=31 // loop_footer_branch
          %287 = sbr.rel target = $region46
        $region51: #{tpu_custom_call.1} parent=31 // loop_exit
          _
        %v309 = vld [vmem:[%s265] sm:$0xff]
        %v310 = vadd.f32 %v309, %v293
        %311 = vst [vmem:[%s265] sm:$0xff] %v310
        %s312 = sand.u32 %s133, 1
        %s313 = scalar_lea.sflag [#allocation5], %s312
        %s314 = sand.u32 %s133, 1
        %s315 = smul.addr %s314, 8
        %s316 = scalar_lea.vmem [#allocation8], %s315
        // Predicated region
        $region52: #{tpu_custom_call.1} parent=31 // pred_check
          %p317 = pneg %p143
        $region53: #{tpu_custom_call.1} parent=31 // pred_check_branch
          %319 = sbr.rel (%p317) target = $region55
        $region54: #{tpu_custom_call.1} parent=31 // pred_region
          %s321 = ssub.s32 128, 128
          %322 = vsyncadd %s313, %s321
          %s323 = smul.addr %s28, 128
          %s324 = scalar_lea.hbm %s3, %s323
          %s326 = sshll.u32 %s316, 4
          %s327 = int_to_ptr.vmem [resolvable:$true] %s326
          %329 = dma.vmem_to_hbm [thread:$0]  %s327, 128, %s324, %s313
        $region55: #{tpu_custom_call.1} parent=31 // pred_fallthru
          _
      $region32: #{tpu_custom_call.1} parent=5 // pred_fallthru
        _
      %p330 = scmp.le.s32.totalorder 2, %s19
      // Predicated region
      $region56: #{tpu_custom_call.1} parent=5 // pred_check
        %p331 = pneg %p330
      $region57: #{tpu_custom_call.1} parent=5 // pred_check_branch
        %333 = sbr.rel (%p331) target = $region59
      $region58: #{tpu_custom_call.1} parent=5 // pred_region
        %s334 = ssub.s32 %s19, 2
        // Predicated region
        $region60: #{tpu_custom_call.1} parent=58 // pred_check
          %p335 = pneg %p149
        $region61: #{tpu_custom_call.1} parent=58 // pred_check_branch
          %337 = sbr.rel (%p335) target = $region63
        $region62: #{tpu_custom_call.1} parent=58 // pred_region
          %s338 = sand.u32 %s134, 1
          %s339 = scalar_lea.sflag [#allocation5], %s338
          %s340 = sand.u32 %s134, 1
          %s341 = smul.addr %s340, 8
          %s342 = scalar_lea.vmem [#allocation8], %s341
          %343 = dma.done %s339, 128
        $region63: #{tpu_custom_call.1} parent=58 // pred_fallthru
          _
      $region59: #{tpu_custom_call.1} parent=5 // pred_fallthru
        _
    $region6: #{tpu_custom_call.1} parent=1 // loop_footer
      %s23 = sadd.s32 1, %s19
    $region7: #{tpu_custom_call.1} parent=1 // loop_footer_branch
      %18 = sbr.rel target = $region3
    $region8: #{tpu_custom_call.1} parent=1 // loop_exit
      _
    %344 = vsyncpa [#allocation4], 1
    %s345 = scalar_lea.sflag [#allocation4], 1
    %346 = vsyncpa %s345, 1
    %347 = vsyncpa [#allocation7], 1
    %s348 = scalar_lea.sflag [#allocation7], 1
    %349 = vsyncpa %s348, 1
    %350 = vsyncpa [#allocation5], 1
    %s351 = scalar_lea.sflag [#allocation5], 1
    %352 = vsyncpa %s351, 1

</llo_original>
